<compile_context>
chip_gen: v7x
topology: tpu7x:2x2x1
jax: 0.10.0
libtpu: 0.0.40
codegen_flags: <defaults>
</compile_context>

<pallas_src>
import jax
import jax.numpy as jnp
from jax.experimental import pallas as pl
from jax.experimental.pallas import tpu as pltpu


_MIB = 1024 * 1024
_LANE = 128
# If the hardware query fails, assume the smallest/most constrained part
# (64 MiB VMEM, 2 TensorCores = v7x-class); those settings also run fine on
# the 128 MiB single-TC generations.
_FALLBACK_VMEM_BYTES = 64 * _MIB
# Below this total size the ~0.35 us/grid-step overhead dominates; don't
# bother splitting work across TensorCores.
_MEGACORE_MIN_BYTES = 1 * _MIB


# ----------------------------------------------------------------------------
# Pallas kernel: lane-dense blocked pass-through
# ----------------------------------------------------------------------------
def _copy_kernel(x_ref, o_ref):
    # Whole current (tm, tn) VMEM tile in -> same tile out.  tn is either the
    # full row width or a large multiple of 128, so the writeback stays an
    # unmasked, lane-dense vst.
    o_ref[...] = x_ref[...]


# ----------------------------------------------------------------------------
# Tiling helpers
# ----------------------------------------------------------------------------
def _vmem_capacity_bytes() -> int:
    """Per-TensorCore VMEM capacity; conservative fallback if unavailable."""
    try:
        return int(pltpu.get_tpu_info().vmem_capacity_bytes)
    except Exception:  # query unavailable (interpret mode, older jax, ...)
        return _FALLBACK_VMEM_BYTES


def _sublane_multiple(itemsize: int) -> int:
    """Row-block granularity: packed dtypes tile as (16,128)/(32,128)."""
    return max(8, 32 // max(1, itemsize))   # f32->8, bf16->16, int8/fp8->32


def _round_down(v: int, mult: int) -> int:
    return max(mult, (v // mult) * mult)


def _round_up(v: int, mult: int) -> int:
    return ((v + mult - 1) // mult) * mult


# ----------------------------------------------------------------------------
# Wrapper
# ----------------------------------------------------------------------------
def identity_pallas(
    x: jax.Array,
    *,
    row_block: int | None = None,
    donate_input: bool = False,
    target_tile_bytes: int | None = None,
) -> jax.Array:
    """Blocked HBM pass-through of a 2-D array (scaffold kernel).

    Tiles are kept lane-dense: full row width where possible, otherwise
    column blocks that are large multiples of 128.  Row blocks are rounded to
    the dtype's packed-sublane multiple, non-divisible extents are handled by
    a pl.cdiv grid (Pallas masks the tail), and the scoped VMEM limit is
    derived from the real double-buffered window footprint.

    donate_input=True aliases the output onto x (saves the output HBM
    allocation, NOT bandwidth) and invalidates x on device after the call.
    """
    assert x.ndim == 2, "identity_pallas expects a 2-D array"
    m, n = x.shape
    itemsize = jnp.dtype(x.dtype).itemsize
    sub = _sublane_multiple(itemsize)
    row_bytes = n * itemsize
    total_bytes = m * row_bytes

    vmem_cap = _vmem_capacity_bytes()
    # 64 MiB VMEM per TensorCore => v7x-class chip: smaller tiles, and the
    # parallel grid should split evenly across its 2 TensorCores.
    small_vmem = vmem_cap <= 64 * _MIB
    if target_tile_bytes is None:
        target_tile_bytes = 4 * _MIB if small_vmem else 16 * _MIB

    # ---------------- choose (tm, tn) ----------------
    tn = n
    if row_block is not None:
        # Explicit override: still enforce (8,128) / packed-dtype alignment.
        tm = min(row_block, m)
        if tm < m:
            tm = min(_round_up(tm, sub), m)
    elif sub * row_bytes > target_tile_bytes and n > _LANE:
        # Rows so wide that even a minimum-sublane full-width tile exceeds the
        # budget: block columns in multiples of 128, keep tiles lane-dense.
        tn = min(n, _round_down(target_tile_bytes // (sub * itemsize), _LANE))
        tm = min(m, sub)
    else:
        # Full-width (lane-dense) row blocks sized to ~target_tile_bytes.
        tm = target_tile_bytes // max(1, row_bytes)
        if tm >= m:
            tm = m
        else:
            tm = _round_down(min(tm, m), sub)
        # 2-TensorCore chips: make sure both cores get work on large copies.
        if small_vmem and total_bytes >= _MEGACORE_MIN_BYTES and m >= 2 * sub:
            tm = min(tm, min(_round_up(pl.cdiv(m, 2), sub), m))

    grid_m = pl.cdiv(m, tm)
    grid_n = pl.cdiv(n, tn)

    # 2-TensorCore chips: an odd step count gives a ceil/floor imbalance
    # between cores; shrink tm slightly (bounded search) to land on an even
    # grid.  Auto path only — an explicit row_block is respected as given.
    if (
        row_block is None
        and small_vmem
        and grid_n == 1
        and grid_m > 1
        and grid_m % 2 == 1
        and total_bytes >= _MEGACORE_MIN_BYTES
    ):
        t = tm
        while t - sub >= max(sub, tm // 2):
            t -= sub
            if pl.cdiv(m, t) % 2 == 0:
                tm = t
                grid_m = pl.cdiv(m, t)
                break

    # ---------------- VMEM budget ----------------
    # BlockSpec double-buffers BOTH the input window and the output window
    # (aliasing shares the HBM buffer, not the VMEM windows), so the
    # pipelined footprint is ~4 tiles; add headroom for Mosaic scratch and
    # cap well below physical capacity.
    tile_bytes = tm * tn * itemsize
    vmem_limit = 4 * tile_bytes + 8 * _MIB
    vmem_limit = max(16 * _MIB, min(vmem_limit, (vmem_cap * 5) // 8))

    extra = {}
    if donate_input:
        # P8 pattern: write back into the caller's HBM buffer.  Saves the
        # output allocation only — the kernel still reads N and writes N
        # bytes of HBM — and x is invalidated on device after this call.
        extra["input_output_aliases"] = {0: 0}

    return pl.pallas_call(
        _copy_kernel,
        out_shape=jax.ShapeDtypeStruct((m, n), x.dtype),
        grid=(grid_m, grid_n),
        in_specs=[pl.BlockSpec((tm, tn), lambda i, j: (i, j))],
        out_specs=pl.BlockSpec((tm, tn), lambda i, j: (i, j)),
        compiler_params=pltpu.CompilerParams(
            dimension_semantics=("parallel", "parallel"),
            vmem_limit_bytes=int(vmem_limit),
        ),
        **extra,
    )(x)


# ----------------------------------------------------------------------------
# Module-equivalent wrapper
# ----------------------------------------------------------------------------
class HardAttentionPallas:
    """JAX/Pallas equivalent of the (empty) PyTorch HardAttention module."""

    def __init__(self):
        # Reference __init__ creates no parameters.
        pass

    def forward(self):
        # Reference forward takes no arguments, does nothing, returns None.
        return None

    __call__ = forward


# ----------------------------------------------------------------------------
# Demo / smoke test
# ----------------------------------------------------------------------------
if __name__ == "__main__":
    # Exact semantics check of the module itself.
    mod = HardAttentionPallas()
    assert mod() is None  # must be None, like the PyTorch module's forward

    key = jax.random.PRNGKey(0)
    k1, k2, k3, k4, k5 = jax.random.split(key, 5)

    # Test 1: small f32 array -> single full-array block (auto tile sizing).
    x1 = jax.random.normal(k1, (16, 256), dtype=jnp.float32)
    y1 = jax.block_until_ready(identity_pallas(x1))
    assert y1.shape == (16, 256) and y1.dtype == jnp.float32
    assert bool(jnp.allclose(y1, x1))

    # Test 2: forced multi-step row grid (4 blocks) to exercise pipelining.
    x2 = jax.random.normal(k2, (256, 384), dtype=jnp.float32)
    y2 = jax.block_until_ready(identity_pallas(x2, row_block=64))
    assert y2.shape == (256, 384) and y2.dtype == jnp.float32
    assert bool(jnp.allclose(y2, x2))

    # Test 3: bf16 with a non-aligned row_block override -> dtype-aware
    # rounding to a multiple of 16 sublanes.
    x3 = jax.random.normal(k3, (128, 256), dtype=jnp.float32).astype(jnp.bfloat16)
    y3 = jax.block_until_ready(identity_pallas(x3, row_block=20))
    assert y3.shape == (128, 256) and y3.dtype == jnp.bfloat16
    assert bool(jnp.all(y3 == x3))

    # Test 4: tiny tile target forces the column-blocking (2-D grid) path.
    x4 = jax.random.normal(k4, (32, 1024), dtype=jnp.float32)
    y4 = jax.block_until_ready(
        identity_pallas(x4, target_tile_bytes=16 * 1024)
    )
    assert y4.shape == (32, 1024)
    assert bool(jnp.allclose(y4, x4))

    # Test 5: opt-in donation (output aliased onto the input buffer).
    x5 = jax.random.normal(k5, (64, 256), dtype=jnp.float32)
    x5_host = jax.device_get(x5)          # x5 is invalidated by donation
    y5 = jax.block_until_ready(identity_pallas(x5, donate_input=True))
    assert y5.shape == (64, 256)
    assert bool(jnp.allclose(y5, x5_host))

    print("KERNEL_OK")
</pallas_src>

<mosaic_0001>
module attributes {stable_mosaic.version = 11 : i64} {
  func.func @_copy_kernel(%arg0: i32, %arg1: i32, %arg2: memref<16x256xf32, #tpu.memory_space<vmem>>, %arg3: memref<16x256xf32, #tpu.memory_space<vmem>>) attributes {dimension_semantics = [#tpu.dimension_semantics<parallel>, #tpu.dimension_semantics<parallel>], iteration_bounds = array<i64: 1, 1>, scalar_prefetch = 0 : i64, scratch_operands = 0 : i64, tpu.core_type = #tpu.core_type<tc>, window_params = [{transform_indices = @transform_0, window_bounds = array<i64: 16, 256>}, {transform_indices = @transform_1, window_bounds = array<i64: 16, 256>}]} {
    %c0 = arith.constant 0 : index
    %c0_0 = arith.constant 0 : index
    %0 = vector.load %arg2[%c0, %c0_0] : memref<16x256xf32, #tpu.memory_space<vmem>>, vector<16x256xf32>
    %c0_1 = arith.constant 0 : index
    %c0_2 = arith.constant 0 : index
    %1 = vector.load %arg3[%c0_1, %c0_2] : memref<16x256xf32, #tpu.memory_space<vmem>>, vector<16x256xf32>
    tpu.vector_store %arg3[%c0_1, %c0_2], %0 {strides = array<i32>} : memref<16x256xf32, #tpu.memory_space<vmem>>, vector<16x256xf32>,
    return
  }
  func.func @transform_0(%arg0: i32, %arg1: i32) -> (i32, i32) {
    %c0_i32 = arith.constant 0 : i32
    return %arg0, %arg1 : i32, i32
  }
  func.func @transform_1(%arg0: i32, %arg1: i32) -> (i32, i32) {
    %c0_i32 = arith.constant 0 : i32
    return %arg0, %arg1 : i32, i32
  }
}

</mosaic_0001>

<llo_original>
// kernel: tpu_custom_call.1
$region0: #{tpu_custom_call.1}
  #allocation0 [shape = 'u32[]', space=smem, size = 0x4, offset = 0x4, fixed_abs, tag = 'smem constant byte address 0x4 - core index']
  #allocation1 [shape = 'u32[144,128]{1,0:T(1,128)}', space=vmem, size = 0x12000, scoped, tag = 'internal scratch']
  %s0 = inlined_call_operand.hbm [shape: f32[16,256], index: 0, kind: input, shape index: {}]
  %s1 = inlined_call_operand.hbm [shape: f32[16,256], index: 1, kind: output, shape index: {}]
  %s2 = sld [smem:[#allocation0]]
  $region18: #{tpu_custom_call.1} parent=0
    _
  %s4 = ssub.s32 1, %s2
  %s5 = scalar_select 0, %s4, %s2
  $region1: #{tpu_custom_call.1} parent=0
    #allocation2 [shape = 'u8[16384]{0}', space=vmem, size = 0x4000, scoped, tag = 'input window, operand 0, single buffered']
    #allocation3 [shape = 's32[1]{0}', space=sflag, size = 0x4, scoped, tag = 'scoped memory for tpu_custom_call.1']
    #allocation4 [shape = 's32[1]{0}', space=sflag, size = 0x4, scoped, tag = 'scoped memory for tpu_custom_call.1']
    #allocation5 [shape = 'u8[16384]{0}', space=vmem, size = 0x4000, scoped, tag = 'output window, operand 0, single buffered']
    %6 = vsyncpa [#allocation3], 0
    %7 = vsyncpa [#allocation4], 0
    // Predicated region
    $region2: #{tpu_custom_call.1} parent=1 // pred_check
      _
    $region3: #{tpu_custom_call.1} parent=1 // pred_check_branch
      %9 = sbr.rel (0) target = $region5
    $region4: #{tpu_custom_call.1} parent=1 // pred_region
      %s11 = ssub.s32 512, 512
      %12 = vsyncadd [#allocation3], %s11
      %s13 = sshll.u32 [#allocation2], 4
      %s14 = int_to_ptr.vmem [resolvable:$true] %s13
      %19 = dma.hbm_to_vmem [thread:$0]  %s0, 512, %s14, [#allocation3], 256, 256, 16
    $region5: #{tpu_custom_call.1} parent=1 // pred_fallthru
      _
    // Predicated region
    $region6: #{tpu_custom_call.1} parent=1 // pred_check
      _
    $region7: #{tpu_custom_call.1} parent=1 // pred_check_branch
      %21 = sbr.rel (0) target = $region9
    $region8: #{tpu_custom_call.1} parent=1 // pred_region
      %22 = dma.done [#allocation3], 512
    $region9: #{tpu_custom_call.1} parent=1 // pred_fallthru
      _
    %v23 = vld [vmem:[#allocation2] sm:$0xff]
    %v24 = vld [vmem:[#allocation2 + $0x8] sm:$0xff]
    %v25 = vld [vmem:[#allocation2 + $0x10] sm:$0xff]
    %v26 = vld [vmem:[#allocation2 + $0x18] sm:$0xff]
    %27 = vst [vmem:[#allocation5] sm:$0xff] %v23
    %28 = vst [vmem:[#allocation5 + $0x8] sm:$0xff] %v24
    %29 = vst [vmem:[#allocation5 + $0x10] sm:$0xff] %v25
    %30 = vst [vmem:[#allocation5 + $0x18] sm:$0xff] %v26
    // Predicated region
    $region10: #{tpu_custom_call.1} parent=1 // pred_check
      _
    $region11: #{tpu_custom_call.1} parent=1 // pred_check_branch
      %32 = sbr.rel (0) target = $region13
    $region12: #{tpu_custom_call.1} parent=1 // pred_region
      %s34 = ssub.s32 512, 512
      %35 = vsyncadd [#allocation4], %s34
      %s36 = sshll.u32 [#allocation5], 4
      %s37 = int_to_ptr.vmem [resolvable:$true] %s36
      %42 = dma.vmem_to_hbm [thread:$0]  %s37, 512, %s1, [#allocation4], 256, 256, 16
    $region13: #{tpu_custom_call.1} parent=1 // pred_fallthru
      _
    // Predicated region
    $region14: #{tpu_custom_call.1} parent=1 // pred_check
      _
    $region15: #{tpu_custom_call.1} parent=1 // pred_check_branch
      %44 = sbr.rel (0) target = $region17
    $region16: #{tpu_custom_call.1} parent=1 // pred_region
      %45 = dma.done [#allocation4], 512
    $region17: #{tpu_custom_call.1} parent=1 // pred_fallthru
      _
    %46 = vsyncpa [#allocation3], 1
    %47 = vsyncpa [#allocation4], 1

</llo_original>
